<compile_context>
chip_gen: v7x
topology: tpu7x:2x2x1
jax: 0.10.0
libtpu: 0.0.40
codegen_flags: <defaults>
</compile_context>

<pallas_src>
import jax
import jax.numpy as jnp
from jax.experimental import pallas as pl
from jax.experimental.pallas import tpu as pltpu

# ----------------------------- config ---------------------------------------
EMBED = 32
HEADS = 4
HEAD_DIM = EMBED // HEADS
HD = HEADS * HEAD_DIM            # 32
KV_RANK = 16
Q_RANK = 16
FF_HID = 4 * EMBED               # 128
EPS = 1e-6
SEQ = 8
BATCH = 2
BS = BATCH * SEQ                 # 16 rows after batch fold
NEG = -1e30

LOG2_BS = BS.bit_length() - 1
LOG2_HEAD_DIM = HEAD_DIM.bit_length() - 1
assert (1 << LOG2_BS) == BS and (1 << LOG2_HEAD_DIM) == HEAD_DIM

# MAT_A column offsets (32 rows: all matmul weights)
A_W1 = 0                                   # (32, 128)
A_W2T = A_W1 + FF_HID                      # (32, 128)  w2 transposed
A_WDOWN = A_W2T + FF_HID                   # (32, 32)   [W_dkv | W_dq]
A_WUP = A_WDOWN + KV_RANK + Q_RANK         # (32, 160)  block-diag up-proj
A_WO = A_WUP + 5 * HD                      # (32, 32)
A_COLS = A_WO + EMBED                      # 480

# MAT_B column offsets (16 rows: rope / mask / pre-broadcast 1-D params)
B_COS = 0                                  # (16, 32)
B_SIN = B_COS + HD                         # (16, 32)
B_MASK = B_SIN + HD                        # (16, 64)
B_GATTN = B_MASK + HEADS * BS              # (16, 32)
B_BDOWN = B_GATTN + EMBED                  # (16, 32)
B_GC = B_BDOWN + KV_RANK + Q_RANK          # (16, 16)
B_BO = B_GC + KV_RANK                      # (16, 32)
B_GFF = B_BO + EMBED                       # (16, 32)
B_B1 = B_GFF + EMBED                       # (16, 128)
B_B2 = B_B1 + FF_HID                       # (16, 32)
B_COLS = B_B2 + EMBED                      # 432


# ----------------------------- kernel ---------------------------------------
def transformer_block_kernel(x_ref, mat_a_ref, mat_b_ref, out_ref):
    # ---- unpack MAT_A (static, zero-cost slices) ----
    w1 = mat_a_ref[:, A_W1:A_W1 + FF_HID]
    w2t = mat_a_ref[:, A_W2T:A_W2T + FF_HID]
    w_down = mat_a_ref[:, A_WDOWN:A_WDOWN + KV_RANK + Q_RANK]
    w_up = mat_a_ref[:, A_WUP:A_WUP + 5 * HD]
    w_o = mat_a_ref[:, A_WO:A_WO + EMBED]

    # ---- unpack MAT_B ----
    cos_f = mat_b_ref[:, B_COS:B_COS + HD]
    sin_f = mat_b_ref[:, B_SIN:B_SIN + HD]
    mask_b = mat_b_ref[:, B_MASK:B_MASK + HEADS * BS]
    g_attn = mat_b_ref[:, B_GATTN:B_GATTN + EMBED]
    b_down = mat_b_ref[:, B_BDOWN:B_BDOWN + KV_RANK + Q_RANK]
    g_c = mat_b_ref[:, B_GC:B_GC + KV_RANK]
    b_o = mat_b_ref[:, B_BO:B_BO + EMBED]
    g_ff = mat_b_ref[:, B_GFF:B_GFF + EMBED]
    b1 = mat_b_ref[:, B_B1:B_B1 + FF_HID]
    b2 = mat_b_ref[:, B_B2:B_B2 + EMBED]

    x = x_ref[...]                               # (BS, E), batch folded into rows

    def rms(h, g_b):
        ms = jnp.mean(h * h, axis=-1, keepdims=True)
        return h * jax.lax.rsqrt(ms + EPS) * g_b

    def mm(a, b):
        return jnp.dot(a, b, preferred_element_type=jnp.float32)

    def mm_tb(a, b):  # a @ b.T without materializing a transpose (MXU handles it)
        return jax.lax.dot_general(a, b, (((1,), (1,)), ((), ())),
                                   preferred_element_type=jnp.float32)

    # per-head block-diagonal selector, rebuilt in-kernel (saves a DMA stream):
    # blkm[h*BS + t, d] = 1  iff  dim d belongs to head h
    row_head = jnp.right_shift(
        jax.lax.broadcasted_iota(jnp.int32, (HEADS * BS, HD), 0), LOG2_BS)
    col_head = jnp.right_shift(
        jax.lax.broadcasted_iota(jnp.int32, (HEADS * BS, HD), 1), LOG2_HEAD_DIM)
    blkm = (row_head == col_head).astype(jnp.float32)           # (H*BS, HD)

    # ---------------- multi-head latent attention ----------------
    h = rms(x, g_attn)
    c_all = mm(h, w_down) + b_down                               # push 1: [c_kv | c_q]
    c_kv = rms(c_all[:, 0:KV_RANK], g_c)
    c_fused = jnp.concatenate([c_kv, c_all[:, KV_RANK:]], axis=1)

    up = mm(c_fused, w_up)                                       # push 2: fused kv/q up-proj
    k = up[:, 0:HD] * cos_f + up[:, HD:2 * HD] * sin_f
    v = up[:, 2 * HD:3 * HD]
    q = up[:, 3 * HD:4 * HD] * cos_f + up[:, 4 * HD:5 * HD] * sin_f   # pre-scaled by 1/sqrt(d)

    # all heads in one shot via block-diagonal K / V slabs
    k_blk = jnp.concatenate([k] * HEADS, axis=0) * blkm          # (H*BS, HD)
    v_blk = jnp.concatenate([v] * HEADS, axis=0) * blkm          # (H*BS, HD)
    scores = mm_tb(q, k_blk) + mask_b                            # push 3: (BS, H*BS)
    scores = scores - jnp.max(scores, axis=-1, keepdims=True)
    p = jnp.exp(scores)

    pv = mm(p, jnp.concatenate([v_blk, blkm], axis=1))           # push 4: PV | denom fused
    attn = pv[:, 0:HD] * pl.reciprocal(pv[:, HD:2 * HD], approx=True)

    x = x + mm(attn, w_o) + b_o                                  # push 5, residual 1

    # ---------------- feed forward ----------------
    hf = rms(x, g_ff)
    hf = mm(hf, w1) + b1                                         # push 6
    hf = hf * jax.nn.sigmoid(hf)                                 # SiLU
    out_ref[...] = x + mm_tb(hf, w2t) + b2                       # push 7, residual 2


# ----------------------------- wrapper ---------------------------------------
def transformer_block(x, packed):
    B, S, E = x.shape
    mat_a, mat_b = packed
    out2 = pl.pallas_call(
        transformer_block_kernel,
        out_shape=jax.ShapeDtypeStruct((B * S, E), x.dtype),
        in_specs=[pl.BlockSpec(memory_space=pltpu.MemorySpace.VMEM)] * 3,
        out_specs=pl.BlockSpec(memory_space=pltpu.MemorySpace.VMEM),
    )(x.reshape(B * S, E), mat_a, mat_b)
    return out2.reshape(B, S, E)


# ----------------------------- param init / rope -----------------------------
def init_params(key):
    def w(key, shape, scale=0.05):
        return (scale * jax.random.normal(key, shape)).astype(jnp.float32)

    ks = jax.random.split(key, 10)
    params = {
        # attention (weights already transposed to (in, out))
        "g_attn": jnp.ones((EMBED,), jnp.float32),
        "w_dkv": w(ks[0], (EMBED, KV_RANK)),
        "b_dkv": jnp.zeros((KV_RANK,), jnp.float32),
        "g_c": jnp.ones((KV_RANK,), jnp.float32),
        "w_uk": w(ks[1], (KV_RANK, HD)),
        "w_uv": w(ks[2], (KV_RANK, HD)),
        "w_dq": w(ks[3], (EMBED, Q_RANK)),
        "b_dq": jnp.zeros((Q_RANK,), jnp.float32),
        "w_uq": w(ks[4], (Q_RANK, HD)),
        "w_o": w(ks[5], (HD, EMBED)),
        "b_o": jnp.zeros((EMBED,), jnp.float32),
        # feed forward
        "g_ff": jnp.ones((EMBED,), jnp.float32),
        "w1": w(ks[6], (EMBED, FF_HID)),
        "b1": jnp.zeros((FF_HID,), jnp.float32),
        "w2": w(ks[7], (FF_HID, EMBED)),
        "b2": jnp.zeros((EMBED,), jnp.float32),
    }

    # rotary tables (half-split, theta=10000), tiled over heads -> (S, H*D)
    inv_freq = 1.0 / (10000.0 ** (jnp.arange(0, HEAD_DIM, 2, dtype=jnp.float32) / HEAD_DIM))
    pos = jnp.arange(SEQ, dtype=jnp.float32)
    ang = pos[:, None] * inv_freq[None, :]                    # (S, D/2)
    cos_h = jnp.concatenate([jnp.cos(ang), jnp.cos(ang)], axis=-1)
    sin_h = jnp.concatenate([jnp.sin(ang), jnp.sin(ang)], axis=-1)
    params["cos_f"] = jnp.tile(cos_h, (1, HEADS))             # (S, H*D)
    params["sin_f"] = jnp.tile(sin_h, (1, HEADS))

    # rotate_half as a per-head block-diagonal permutation matrix
    half = HEAD_DIM // 2
    p = jnp.zeros((HEAD_DIM, HEAD_DIM), jnp.float32)
    p = p.at[jnp.arange(half) + half, jnp.arange(half)].set(-1.0)
    p = p.at[jnp.arange(half), jnp.arange(half) + half].set(1.0)
    params["p_rot"] = jnp.kron(jnp.eye(HEADS, dtype=jnp.float32), p)  # (H*D, H*D)
    return params


def pack_params(p):
    """Fuse / fold weights and pack every operand into two consolidated buffers."""
    scale = 1.0 / (HEAD_DIM ** 0.5)

    # fused down-projection and block-diagonal fused up-projection
    w_down = jnp.concatenate([p["w_dkv"], p["w_dq"]], axis=1)            # (E, KV+Q)
    b_down = jnp.concatenate([p["b_dkv"], p["b_dq"]], axis=0)
    w_kv_cols = jnp.concatenate([p["w_uk"], p["w_uk"] @ p["p_rot"], p["w_uv"]], axis=1)  # (KV, 3HD)
    w_q_cols = jnp.concatenate([p["w_uq"], p["w_uq"] @ p["p_rot"]], axis=1) * scale      # (Q, 2HD)
    w_up = jnp.zeros((KV_RANK + Q_RANK, 5 * HD), jnp.float32)
    w_up = w_up.at[:KV_RANK, :3 * HD].set(w_kv_cols)
    w_up = w_up.at[KV_RANK:, 3 * HD:].set(w_q_cols)

    mat_a = jnp.concatenate([p["w1"], p["w2"].T, w_down, w_up, p["w_o"]], axis=1)
    assert mat_a.shape == (EMBED, A_COLS)

    # rope tables over the folded (B*S) axis
    cos_bs = jnp.tile(p["cos_f"], (BATCH, 1))                            # (BS, HD)
    sin_bs = jnp.tile(p["sin_f"], (BATCH, 1))

    # additive mask over the folded axis: valid = same batch AND causal
    r = jnp.arange(BS)
    same_batch = (r[:, None] // SEQ) == (r[None, :] // SEQ)
    causal = (r[:, None] % SEQ) >= (r[None, :] % SEQ)
    bias = jnp.where(same_batch & causal, 0.0, NEG).astype(jnp.float32)  # (BS, BS)
    mask_b = jnp.tile(bias, (1, HEADS))                                  # (BS, H*BS)

    def bc(v):  # pre-broadcast a 1-D gain/bias to all BS rows (no in-kernel broadcast)
        return jnp.broadcast_to(v[None, :], (BS, v.shape[0])).astype(jnp.float32)

    mat_b = jnp.concatenate([
        cos_bs, sin_bs, mask_b,
        bc(p["g_attn"]), bc(b_down), bc(p["g_c"]), bc(p["b_o"]),
        bc(p["g_ff"]), bc(p["b1"]), bc(p["b2"]),
    ], axis=1)
    assert mat_b.shape == (BS, B_COLS)

    return mat_a, mat_b


# ----------------------------- pure-JAX reference ----------------------------
def reference(x, p):
    def rms(h, g):
        return h * jax.lax.rsqrt(jnp.mean(h * h, -1, keepdims=True) + EPS) * g

    h = rms(x, p["g_attn"])
    c_kv = rms(h @ p["w_dkv"] + p["b_dkv"], p["g_c"])
    k = c_kv @ p["w_uk"]
    v = c_kv @ p["w_uv"]
    q = (h @ p["w_dq"] + p["b_dq"]) @ p["w_uq"]
    q = q * p["cos_f"] + (q @ p["p_rot"]) * p["sin_f"]
    k = k * p["cos_f"] + (k @ p["p_rot"]) * p["sin_f"]

    B, S, _ = x.shape
    qh = q.reshape(B, S, HEADS, HEAD_DIM).transpose(0, 2, 1, 3)
    kh = k.reshape(B, S, HEADS, HEAD_DIM).transpose(0, 2, 1, 3)
    vh = v.reshape(B, S, HEADS, HEAD_DIM).transpose(0, 2, 1, 3)
    scores = jnp.einsum("bhqd,bhkd->bhqk", qh, kh) / jnp.sqrt(jnp.float32(HEAD_DIM))
    mask = jnp.tril(jnp.ones((S, S), bool))
    scores = jnp.where(mask, scores, NEG)
    pw = jax.nn.softmax(scores, -1)
    ao = jnp.einsum("bhqk,bhkd->bhqd", pw, vh).transpose(0, 2, 1, 3).reshape(B, S, HD)
    x = x + ao @ p["w_o"] + p["b_o"]

    hf = rms(x, p["g_ff"])
    hf = hf @ p["w1"] + p["b1"]
    hf = hf * jax.nn.sigmoid(hf)
    return x + hf @ p["w2"] + p["b2"]


# ----------------------------- main ------------------------------------------
if __name__ == "__main__":
    key = jax.random.PRNGKey(0)
    kx, kp = jax.random.split(key)
    x = jax.random.normal(kx, (BATCH, SEQ, EMBED), dtype=jnp.float32)
    params = init_params(kp)
    packed = pack_params(params)

    out = jax.block_until_ready(transformer_block(x, packed))
    ref = jax.block_until_ready(reference(x, params))

    assert out.shape == (BATCH, SEQ, EMBED)
    assert jnp.allclose(out, ref, atol=1e-3, rtol=1e-3), float(jnp.max(jnp.abs(out - ref)))

    print("KERNEL_OK")
</pallas_src>

<mosaic_0001>
module attributes {stable_mosaic.version = 11 : i64} {
  func.func @transformer_block_kernel(%arg0: memref<16x32xf32, #tpu.memory_space<vmem>>, %arg1: memref<32x480xf32, #tpu.memory_space<vmem>>, %arg2: memref<16x432xf32, #tpu.memory_space<vmem>>, %arg3: memref<16x32xf32, #tpu.memory_space<vmem>>) attributes {dimension_semantics = [], scalar_prefetch = 0 : i64, scratch_operands = 0 : i64, tpu.core_type = #tpu.core_type<tc>} {
    %c0 = arith.constant 0 : index
    %c0_0 = arith.constant 0 : index
    %0 = vector.load %arg1[%c0, %c0_0] : memref<32x480xf32, #tpu.memory_space<vmem>>, vector<32x128xf32>
    %c0_1 = arith.constant 0 : index
    %c128 = arith.constant 128 : index
    %1 = vector.load %arg1[%c0_1, %c128] : memref<32x480xf32, #tpu.memory_space<vmem>>, vector<32x128xf32>
    %c0_2 = arith.constant 0 : index
    %c256 = arith.constant 256 : index
    %2 = vector.load %arg1[%c0_2, %c256] : memref<32x480xf32, #tpu.memory_space<vmem>>, vector<32x32xf32>
    %c0_3 = arith.constant 0 : index
    %c288 = arith.constant 288 : index
    %3 = vector.load %arg1[%c0_3, %c288] : memref<32x480xf32, #tpu.memory_space<vmem>>, vector<32x160xf32>
    %c0_4 = arith.constant 0 : index
    %c448 = arith.constant 448 : index
    %4 = vector.load %arg1[%c0_4, %c448] : memref<32x480xf32, #tpu.memory_space<vmem>>, vector<32x32xf32>
    %c0_5 = arith.constant 0 : index
    %c0_6 = arith.constant 0 : index
    %5 = vector.load %arg2[%c0_5, %c0_6] : memref<16x432xf32, #tpu.memory_space<vmem>>, vector<16x32xf32>
    %c0_7 = arith.constant 0 : index
    %c32 = arith.constant 32 : index
    %6 = vector.load %arg2[%c0_7, %c32] : memref<16x432xf32, #tpu.memory_space<vmem>>, vector<16x32xf32>
    %c0_8 = arith.constant 0 : index
    %c64 = arith.constant 64 : index
    %7 = vector.load %arg2[%c0_8, %c64] : memref<16x432xf32, #tpu.memory_space<vmem>>, vector<16x64xf32>
    %c0_9 = arith.constant 0 : index
    %c128_10 = arith.constant 128 : index
    %8 = vector.load %arg2[%c0_9, %c128_10] : memref<16x432xf32, #tpu.memory_space<vmem>>, vector<16x32xf32>
    %c0_11 = arith.constant 0 : index
    %c160 = arith.constant 160 : index
    %9 = vector.load %arg2[%c0_11, %c160] : memref<16x432xf32, #tpu.memory_space<vmem>>, vector<16x32xf32>
    %c0_12 = arith.constant 0 : index
    %c192 = arith.constant 192 : index
    %10 = vector.load %arg2[%c0_12, %c192] : memref<16x432xf32, #tpu.memory_space<vmem>>, vector<16x16xf32>
    %c0_13 = arith.constant 0 : index
    %c208 = arith.constant 208 : index
    %11 = vector.load %arg2[%c0_13, %c208] : memref<16x432xf32, #tpu.memory_space<vmem>>, vector<16x32xf32>
    %c0_14 = arith.constant 0 : index
    %c240 = arith.constant 240 : index
    %12 = vector.load %arg2[%c0_14, %c240] : memref<16x432xf32, #tpu.memory_space<vmem>>, vector<16x32xf32>
    %c0_15 = arith.constant 0 : index
    %c272 = arith.constant 272 : index
    %13 = vector.load %arg2[%c0_15, %c272] : memref<16x432xf32, #tpu.memory_space<vmem>>, vector<16x128xf32>
    %c0_16 = arith.constant 0 : index
    %c400 = arith.constant 400 : index
    %14 = vector.load %arg2[%c0_16, %c400] : memref<16x432xf32, #tpu.memory_space<vmem>>, vector<16x32xf32>
    %c0_17 = arith.constant 0 : index
    %c0_18 = arith.constant 0 : index
    %15 = vector.load %arg0[%c0_17, %c0_18] : memref<16x32xf32, #tpu.memory_space<vmem>>, vector<16x32xf32>
    %16 = tpu.iota {dimensions = array<i32: 0>} : vector<64x32xi32>
    %c4_i32 = arith.constant 4 : i32
    %17 = vector.broadcast %c4_i32 : i32 to vector<64x32xi32>
    %18 = arith.shrsi %16, %17 : vector<64x32xi32>
    %19 = tpu.iota {dimensions = array<i32: 1>} : vector<64x32xi32>
    %c3_i32 = arith.constant 3 : i32
    %20 = vector.broadcast %c3_i32 : i32 to vector<64x32xi32>
    %21 = arith.shrsi %19, %20 : vector<64x32xi32>
    %22 = arith.cmpi eq, %18, %21 : vector<64x32xi32>
    %23 = arith.extui %22 : vector<64x32xi1> to vector<64x32xi32>
    %24 = arith.sitofp %23 : vector<64x32xi32> to vector<64x32xf32>
    %25 = arith.mulf %15, %15 : vector<16x32xf32>
    %cst = arith.constant dense<0.000000e+00> : vector<16xf32>
    %26 = vector.multi_reduction <add>, %25, %cst [1] : vector<16x32xf32> to vector<16xf32>
    %27 = vector.shape_cast %26 : vector<16xf32> to vector<16x1xf32>
    %cst_19 = arith.constant 3.200000e+01 : f32
    %28 = vector.broadcast %cst_19 : f32 to vector<16x1xf32>
    %29 = arith.divf %27, %28 : vector<16x1xf32>
    %cst_20 = arith.constant 9.99999997E-7 : f32
    %30 = vector.broadcast %cst_20 : f32 to vector<16x1xf32>
    %31 = arith.addf %29, %30 : vector<16x1xf32>
    %32 = math.rsqrt %31 : vector<16x1xf32>
    %33 = vector.broadcast %32 : vector<16x1xf32> to vector<16x32xf32>
    %34 = arith.mulf %15, %33 : vector<16x32xf32>
    %35 = arith.mulf %34, %8 : vector<16x32xf32>
    %cst_21 = arith.constant dense<0.000000e+00> : vector<16x32xf32>
    %36 = tpu.matmul %35, %2, %cst_21 {dimension_numbers = #tpu.dot_dimension_numbers<[1], [0], [0], [1], [0, 0, 1, 1], [], []>} : vector<16x32xf32>, vector<32x32xf32>, vector<16x32xf32> -> vector<16x32xf32>
    %37 = arith.addf %36, %9 : vector<16x32xf32>
    %38 = vector.extract_strided_slice %37 {offsets = [0, 0], sizes = [16, 16], strides = [1, 1]} : vector<16x32xf32> to vector<16x16xf32>
    %39 = arith.mulf %38, %38 : vector<16x16xf32>
    %cst_22 = arith.constant dense<0.000000e+00> : vector<16xf32>
    %40 = vector.multi_reduction <add>, %39, %cst_22 [1] : vector<16x16xf32> to vector<16xf32>
    %41 = vector.shape_cast %40 : vector<16xf32> to vector<16x1xf32>
    %cst_23 = arith.constant 1.600000e+01 : f32
    %42 = vector.broadcast %cst_23 : f32 to vector<16x1xf32>
    %43 = arith.divf %41, %42 : vector<16x1xf32>
    %cst_24 = arith.constant 9.99999997E-7 : f32
    %44 = vector.broadcast %cst_24 : f32 to vector<16x1xf32>
    %45 = arith.addf %43, %44 : vector<16x1xf32>
    %46 = math.rsqrt %45 : vector<16x1xf32>
    %47 = vector.broadcast %46 : vector<16x1xf32> to vector<16x16xf32>
    %48 = arith.mulf %38, %47 : vector<16x16xf32>
    %49 = arith.mulf %48, %10 : vector<16x16xf32>
    %50 = vector.extract_strided_slice %37 {offsets = [0, 16], sizes = [16, 16], strides = [1, 1]} : vector<16x32xf32> to vector<16x16xf32>
    %51 = tpu.concatenate %49, %50 in 1 : vector<16x16xf32>, vector<16x16xf32> -> vector<16x32xf32>
    %cst_25 = arith.constant dense<0.000000e+00> : vector<16x160xf32>
    %52 = tpu.matmul %51, %3, %cst_25 {dimension_numbers = #tpu.dot_dimension_numbers<[1], [0], [0], [1], [0, 0, 1, 1], [], []>} : vector<16x32xf32>, vector<32x160xf32>, vector<16x160xf32> -> vector<16x160xf32>
    %53 = vector.extract_strided_slice %52 {offsets = [0, 0], sizes = [16, 32], strides = [1, 1]} : vector<16x160xf32> to vector<16x32xf32>
    %54 = arith.mulf %53, %5 : vector<16x32xf32>
    %55 = vector.extract_strided_slice %52 {offsets = [0, 32], sizes = [16, 32], strides = [1, 1]} : vector<16x160xf32> to vector<16x32xf32>
    %56 = arith.mulf %55, %6 : vector<16x32xf32>
    %57 = arith.addf %54, %56 : vector<16x32xf32>
    %58 = vector.extract_strided_slice %52 {offsets = [0, 64], sizes = [16, 32], strides = [1, 1]} : vector<16x160xf32> to vector<16x32xf32>
    %59 = vector.extract_strided_slice %52 {offsets = [0, 96], sizes = [16, 32], strides = [1, 1]} : vector<16x160xf32> to vector<16x32xf32>
    %60 = arith.mulf %59, %5 : vector<16x32xf32>
    %61 = vector.extract_strided_slice %52 {offsets = [0, 128], sizes = [16, 32], strides = [1, 1]} : vector<16x160xf32> to vector<16x32xf32>
    %62 = arith.mulf %61, %6 : vector<16x32xf32>
    %63 = arith.addf %60, %62 : vector<16x32xf32>
    %64 = tpu.concatenate %57, %57, %57, %57 in 0 : vector<16x32xf32>, vector<16x32xf32>, vector<16x32xf32>, vector<16x32xf32> -> vector<64x32xf32>
    %65 = arith.mulf %64, %24 : vector<64x32xf32>
    %66 = tpu.concatenate %58, %58, %58, %58 in 0 : vector<16x32xf32>, vector<16x32xf32>, vector<16x32xf32>, vector<16x32xf32> -> vector<64x32xf32>
    %67 = arith.mulf %66, %24 : vector<64x32xf32>
    %cst_26 = arith.constant dense<0.000000e+00> : vector<16x64xf32>
    %68 = tpu.matmul %63, %65, %cst_26 {dimension_numbers = #tpu.dot_dimension_numbers<[1], [1], [0], [0], [0, 0, 1, 0], [], []>} : vector<16x32xf32>, vector<64x32xf32>, vector<16x64xf32> -> vector<16x64xf32>
    %69 = arith.addf %68, %7 : vector<16x64xf32>
    %cst_27 = arith.constant dense<0xFF800000> : vector<16xf32>
    %70 = vector.multi_reduction <maximumf>, %69, %cst_27 [1] : vector<16x64xf32> to vector<16xf32>
    %71 = vector.shape_cast %70 : vector<16xf32> to vector<16x1xf32>
    %72 = vector.broadcast %71 : vector<16x1xf32> to vector<16x64xf32>
    %73 = arith.subf %69, %72 : vector<16x64xf32>
    %74 = math.exp %73 : vector<16x64xf32>
    %75 = tpu.concatenate %67, %24 in 1 : vector<64x32xf32>, vector<64x32xf32> -> vector<64x64xf32>
    %cst_28 = arith.constant dense<0.000000e+00> : vector<16x64xf32>
    %76 = tpu.matmul %74, %75, %cst_28 {dimension_numbers = #tpu.dot_dimension_numbers<[1], [0], [0], [1], [0, 0, 1, 1], [], []>} : vector<16x64xf32>, vector<64x64xf32>, vector<16x64xf32> -> vector<16x64xf32>
    %77 = vector.extract_strided_slice %76 {offsets = [0, 0], sizes = [16, 32], strides = [1, 1]} : vector<16x64xf32> to vector<16x32xf32>
    %78 = vector.extract_strided_slice %76 {offsets = [0, 32], sizes = [16, 32], strides = [1, 1]} : vector<16x64xf32> to vector<16x32xf32>
    %79 = tpu.reciprocal %78 {approx = true} : vector<16x32xf32> -> vector<16x32xf32>
    %80 = arith.mulf %77, %79 : vector<16x32xf32>
    %cst_29 = arith.constant dense<0.000000e+00> : vector<16x32xf32>
    %81 = tpu.matmul %80, %4, %cst_29 {dimension_numbers = #tpu.dot_dimension_numbers<[1], [0], [0], [1], [0, 0, 1, 1], [], []>} : vector<16x32xf32>, vector<32x32xf32>, vector<16x32xf32> -> vector<16x32xf32>
    %82 = arith.addf %15, %81 : vector<16x32xf32>
    %83 = arith.addf %82, %11 : vector<16x32xf32>
    %84 = arith.mulf %83, %83 : vector<16x32xf32>
    %cst_30 = arith.constant dense<0.000000e+00> : vector<16xf32>
    %85 = vector.multi_reduction <add>, %84, %cst_30 [1] : vector<16x32xf32> to vector<16xf32>
    %86 = vector.shape_cast %85 : vector<16xf32> to vector<16x1xf32>
    %cst_31 = arith.constant 3.200000e+01 : f32
    %87 = vector.broadcast %cst_31 : f32 to vector<16x1xf32>
    %88 = arith.divf %86, %87 : vector<16x1xf32>
    %cst_32 = arith.constant 9.99999997E-7 : f32
    %89 = vector.broadcast %cst_32 : f32 to vector<16x1xf32>
    %90 = arith.addf %88, %89 : vector<16x1xf32>
    %91 = math.rsqrt %90 : vector<16x1xf32>
    %92 = vector.broadcast %91 : vector<16x1xf32> to vector<16x32xf32>
    %93 = arith.mulf %83, %92 : vector<16x32xf32>
    %94 = arith.mulf %93, %12 : vector<16x32xf32>
    %cst_33 = arith.constant dense<0.000000e+00> : vector<16x128xf32>
    %95 = tpu.matmul %94, %0, %cst_33 {dimension_numbers = #tpu.dot_dimension_numbers<[1], [0], [0], [1], [0, 0, 1, 1], [], []>} : vector<16x32xf32>, vector<32x128xf32>, vector<16x128xf32> -> vector<16x128xf32>
    %96 = arith.addf %95, %13 : vector<16x128xf32>
    %97 = arith.negf %96 : vector<16x128xf32>
    %98 = math.exp %97 : vector<16x128xf32>
    %cst_34 = arith.constant 1.000000e+00 : f32
    %99 = vector.broadcast %cst_34 : f32 to vector<16x128xf32>
    %100 = arith.addf %99, %98 : vector<16x128xf32>
    %101 = arith.divf %99, %100 : vector<16x128xf32>
    %102 = arith.mulf %96, %101 : vector<16x128xf32>
    %cst_35 = arith.constant dense<0.000000e+00> : vector<16x32xf32>
    %103 = tpu.matmul %102, %1, %cst_35 {dimension_numbers = #tpu.dot_dimension_numbers<[1], [1], [0], [0], [0, 0, 1, 0], [], []>} : vector<16x128xf32>, vector<32x128xf32>, vector<16x32xf32> -> vector<16x32xf32>
    %104 = arith.addf %83, %103 : vector<16x32xf32>
    %105 = arith.addf %104, %14 : vector<16x32xf32>
    %c0_36 = arith.constant 0 : index
    %c0_37 = arith.constant 0 : index
    %106 = vector.load %arg3[%c0_36, %c0_37] : memref<16x32xf32, #tpu.memory_space<vmem>>, vector<16x32xf32>
    tpu.vector_store %arg3[%c0_36, %c0_37], %105 {strides = array<i32>} : memref<16x32xf32, #tpu.memory_space<vmem>>, vector<16x32xf32>,
    return
  }
}

</mosaic_0001>

<llo_original>
// kernel: tpu_custom_call.1
$region0: #{tpu_custom_call.1}
  #allocation0 [shape = 'u32[]', space=smem, size = 0x4, offset = 0x4, fixed_abs, tag = 'smem constant byte address 0x4 - core index']
  #allocation1 [shape = 'u32[144,128]{1,0:T(1,128)}', space=vmem, size = 0x12000, scoped, tag = 'internal scratch']
  %s0 = inlined_call_operand.hbm [shape: f32[16,32], index: 0, kind: input, shape index: {}]
  %s1 = inlined_call_operand.hbm [shape: f32[32,480], index: 1, kind: input, shape index: {}]
  %s2 = inlined_call_operand.hbm [shape: f32[16,432], index: 2, kind: input, shape index: {}]
  %s3 = inlined_call_operand.hbm [shape: f32[16,32], index: 3, kind: output, shape index: {}]
  %s4 = sld [smem:[#allocation0]]
  $region34: #{tpu_custom_call.1} parent=0
    _
  %s6 = ssub.s32 1, %s4
  %s7 = scalar_select 0, %s6, %s4
  $region1: #{tpu_custom_call.1} parent=0
    #allocation2 [shape = 'u8[8192]{0}', space=vmem, size = 0x2000, scoped, tag = 'input window, operand 0, single buffered']
    #allocation3 [shape = 's32[1]{0}', space=sflag, size = 0x4, scoped, tag = 'scoped memory for tpu_custom_call.1']
    #allocation4 [shape = 's32[1]{0}', space=sflag, size = 0x4, scoped, tag = 'scoped memory for tpu_custom_call.1']
    #allocation5 [shape = 'u8[65536]{0}', space=vmem, size = 0x10000, scoped, tag = 'input window, operand 1, single buffered']
    #allocation6 [shape = 's32[1]{0}', space=sflag, size = 0x4, scoped, tag = 'scoped memory for tpu_custom_call.1']
    #allocation7 [shape = 'u8[32768]{0}', space=vmem, size = 0x8000, scoped, tag = 'input window, operand 2, single buffered']
    #allocation8 [shape = 'u8[8192]{0}', space=vmem, size = 0x2000, scoped, tag = 'output window, operand 0, single buffered']
    %8 = vsyncpa [#allocation3], 0
    %9 = vsyncpa [#allocation6], 0
    %10 = vsyncpa [#allocation4], 0
    // Predicated region
    $region2: #{tpu_custom_call.1} parent=1 // pred_check
      _
    $region3: #{tpu_custom_call.1} parent=1 // pred_check_branch
      %12 = sbr.rel (0) target = $region5
    $region4: #{tpu_custom_call.1} parent=1 // pred_region
      %s14 = ssub.s32 256, 256
      %15 = vsyncadd [#allocation3], %s14
      %s16 = sshll.u32 [#allocation2], 4
      %s17 = int_to_ptr.vmem [resolvable:$true] %s16
      %22 = dma.hbm_to_vmem [thread:$0]  %s0, 256, %s17, [#allocation3], 128, 128, 8
    $region5: #{tpu_custom_call.1} parent=1 // pred_fallthru
      _
    // Predicated region
    $region6: #{tpu_custom_call.1} parent=1 // pred_check
      _
    $region7: #{tpu_custom_call.1} parent=1 // pred_check_branch
      %24 = sbr.rel (0) target = $region9
    $region8: #{tpu_custom_call.1} parent=1 // pred_region
      %s26 = ssub.s32 2048, 2048
      %27 = vsyncadd [#allocation6], %s26
      %s28 = sshll.u32 [#allocation5], 4
      %s29 = int_to_ptr.vmem [resolvable:$true] %s28
      %34 = dma.hbm_to_vmem [thread:$0]  %s1, 2048, %s29, [#allocation6], 512, 512, 32
    $region9: #{tpu_custom_call.1} parent=1 // pred_fallthru
      _
    // Predicated region
    $region10: #{tpu_custom_call.1} parent=1 // pred_check
      _
    $region11: #{tpu_custom_call.1} parent=1 // pred_check_branch
      %36 = sbr.rel (0) target = $region13
    $region12: #{tpu_custom_call.1} parent=1 // pred_region
      %s38 = ssub.s32 1024, 1024
      %39 = vsyncadd [#allocation6], %s38
      %s40 = sshll.u32 [#allocation7], 4
      %s41 = int_to_ptr.vmem [resolvable:$true] %s40
      %46 = dma.hbm_to_vmem [thread:$0]  %s2, 1024, %s41, [#allocation6], 512, 512, 32
    $region13: #{tpu_custom_call.1} parent=1 // pred_fallthru
      _
    // Predicated region
    $region14: #{tpu_custom_call.1} parent=1 // pred_check
      _
    $region15: #{tpu_custom_call.1} parent=1 // pred_check_branch
      %48 = sbr.rel (0) target = $region17
    $region16: #{tpu_custom_call.1} parent=1 // pred_region
      %49 = dma.done [#allocation3], 256
    $region17: #{tpu_custom_call.1} parent=1 // pred_fallthru
      _
    // Predicated region
    $region18: #{tpu_custom_call.1} parent=1 // pred_check
      _
    $region19: #{tpu_custom_call.1} parent=1 // pred_check_branch
      %51 = sbr.rel (0) target = $region21
    $region20: #{tpu_custom_call.1} parent=1 // pred_region
      %52 = dma.done [#allocation6], 2048
    $region21: #{tpu_custom_call.1} parent=1 // pred_fallthru
      _
    // Predicated region
    $region22: #{tpu_custom_call.1} parent=1 // pred_check
      _
    $region23: #{tpu_custom_call.1} parent=1 // pred_check_branch
      %54 = sbr.rel (0) target = $region25
    $region24: #{tpu_custom_call.1} parent=1 // pred_region
      %55 = dma.done [#allocation6], 1024
    $region25: #{tpu_custom_call.1} parent=1 // pred_fallthru
      _
    %v56 = vld [vmem:[#allocation5] sm:$0xff]
    %v57 = vld [vmem:[#allocation5 + $0x20] sm:$0xff]
    %v58 = vld [vmem:[#allocation5 + $0x40] sm:$0xff]
    %v59 = vld [vmem:[#allocation5 + $0x60] sm:$0xff]
    %v60 = vld [vmem:[#allocation5 + $0x8] sm:$0xff]
    %v61 = vld [vmem:[#allocation5 + $0x28] sm:$0xff]
    %v62 = vld [vmem:[#allocation5 + $0x48] sm:$0xff]
    %v63 = vld [vmem:[#allocation5 + $0x68] sm:$0xff]
    %v64 = vld [vmem:[#allocation5 + $0x10] sm:$0xff]
    %v65 = vld [vmem:[#allocation5 + $0x30] sm:$0xff]
    %v66 = vld [vmem:[#allocation5 + $0x50] sm:$0xff]
    %v67 = vld [vmem:[#allocation5 + $0x70] sm:$0xff]
    %v68 = vld [vmem:[#allocation5 + $0x18] sm:$0xff]
    %v69 = vld [vmem:[#allocation5 + $0x38] sm:$0xff]
    %v70 = vld [vmem:[#allocation5 + $0x58] sm:$0xff]
    %v71 = vld [vmem:[#allocation5 + $0x78] sm:$0xff]
    %v72 = vld [vmem:[#allocation7] sm:$0xff]
    %v73 = vld [vmem:[#allocation7 + $0x20] sm:$0xff]
    %v74 = vld [vmem:[#allocation7 + $0x8] sm:$0xff]
    %v75 = vld [vmem:[#allocation7 + $0x28] sm:$0xff]
    %v76 = vld [vmem:[#allocation7 + $0x10] sm:$0xff]
    %v77 = vld [vmem:[#allocation7 + $0x30] sm:$0xff]
    %v78 = vld [vmem:[#allocation7 + $0x18] sm:$0xff]
    %v79 = vld [vmem:[#allocation7 + $0x38] sm:$0xff]
    %v80 = vld [vmem:[#allocation2] sm:$0xff]
    %v81 = vld [vmem:[#allocation2 + $0x8] sm:$0xff]
    %v82 = vlaneseq
    %v83 = vshrl.u32 %v82, 7
    %v84 = vadd.s32 %v83, 8
    %v85 = vadd.s32 %v83, 16
    %v86 = vadd.s32 %v83, 24
    %v87 = vadd.s32 %v83, 32
    %v88 = vadd.s32 %v83, 40
    %v89 = vadd.s32 %v83, 48
    %v90 = vadd.s32 %v83, 56
    %v91 = vshra.s32 %v83, 4
    %v92 = vshra.s32 %v84, 4
    %v93 = vshra.s32 %v85, 4
    %v94 = vshra.s32 %v86, 4
    %v95 = vshra.s32 %v87, 4
    %v96 = vshra.s32 %v88, 4
    %v97 = vshra.s32 %v89, 4
    %v98 = vshra.s32 %v90, 4
    %v99 = vlaneseq
    %v100 = vand.u32 %v99, 127
    %v101 = vshra.s32 %v100, 3
    %vm102 = vcmp.eq.s32.totalorder %v91, %v101
    %vm103 = vcmp.eq.s32.totalorder %v92, %v101
    %vm104 = vcmp.eq.s32.totalorder %v93, %v101
    %vm105 = vcmp.eq.s32.totalorder %v94, %v101
    %vm106 = vcmp.eq.s32.totalorder %v95, %v101
    %vm107 = vcmp.eq.s32.totalorder %v96, %v101
    %vm108 = vcmp.eq.s32.totalorder %v97, %v101
    %vm109 = vcmp.eq.s32.totalorder %v98, %v101
    %v110 = vsel %vm102, 1, 0
    %v111 = vsel %vm103, 1, 0
    %v112 = vsel %vm104, 1, 0
    %v113 = vsel %vm105, 1, 0
    %v114 = vsel %vm106, 1, 0
    %v115 = vsel %vm107, 1, 0
    %v116 = vsel %vm108, 1, 0
    %v117 = vsel %vm109, 1, 0
    %v118 = vcvt.s32.f32 %v110
    %v119 = vcvt.s32.f32 %v111
    %v120 = vcvt.s32.f32 %v112
    %v121 = vcvt.s32.f32 %v113
    %v122 = vcvt.s32.f32 %v114
    %v123 = vcvt.s32.f32 %v115
    %v124 = vcvt.s32.f32 %v116
    %v125 = vcvt.s32.f32 %v117
    %v126 = vmul.f32 %v80, %v80
    %v127 = vmul.f32 %v81, %v81
    %vm128 = vcmask 261120
    %v129 = vsel %vm128, %v126, 0.0
    %130 = vadd.xlane.f32.xlu0 %v129
    %v131 = vpop.xlane.xlu0 %130
    %v132 = vsel %vm128, %v127, 0.0
    %133 = vadd.xlane.f32.xlu0 %v132
    %v134 = vpop.xlane.xlu0 %133
    %v135 = vrcp.pop 32.0
    %v136 = vmul.f32 %v131, %v135
    %v137 = vmul.f32 %v134, %v135
    %v138 = vadd.f32 %v136, 1e-06
    %v139 = vadd.f32 %v137, 1e-06
    %v140 = vrsqrt.pop %v138
    %v141 = vrsqrt.pop %v139
    %v142 = vmul.f32 %v80, %v140
    %v143 = vmul.f32 %v81, %v141
    %v144 = vmul.f32 %v142, %v74
    %v145 = vmul.f32 %v143, %v75
    %148 = vrot.lane.b32.xlu0 %v74, 96
    %v149 = vpop.permute.xlu0 %148
    %150 = vrot.lane.b32.xlu0 %v75, 96
    %v151 = vpop.permute.xlu0 %150
    %v155 = vsel %vm128, %v144, 0
    %v158 = vsel %vm128, %v145, 0
    %160 = vmatprep.subr.mxu0 0.0
    %161 = vmatpush1.msra.mxu0 %v64
    %162 = vmatprep.subr.mxu0 0.0
    %163 = vmatpush1.msra.mxu0 %v65
    %164 = vmatprep.subr.mxu0 0.0
    %165 = vmatpush1.msra.mxu0 %v66
    %166 = vmatprep.subr.mxu0 0.0
    %167 = vmatpush1.msra.mxu0 %v67
    %168 = vmatprep.subr.mxu0 0.0
    %169 = vmatpush1.msra.mxu0 0.0
    %170 = vmatprep.subr.mxu0 0.0
    %171 = vmatpush1.msra.mxu0 0.0
    %172 = vmatprep.subr.mxu0 0.0
    %173 = vmatpush1.msra.mxu0 0.0
    %174 = vmatprep.subr.mxu0 0.0
    %175 = vmatpush1.msra.mxu0 0.0
    %176 = vmatprep.subr.mxu0 0.0
    %177 = vmatpush1.msra.mxu0 0.0
    %178 = vmatprep.subr.mxu0 0.0
    %179 = vmatpush1.msra.mxu0 0.0
    %180 = vmatprep.subr.mxu0 0.0
    %181 = vmatpush1.msra.mxu0 0.0
    %182 = vmatprep.subr.mxu0 0.0
    %183 = vmatpush1.msra.mxu0 0.0
    %184 = vmatprep.subr.mxu0 0.0
    %185 = vmatpush1.msra.mxu0 0.0
    %186 = vmatprep.subr.mxu0 0.0
    %187 = vmatpush1.msra.mxu0 0.0
    %188 = vmatprep.subr.mxu0 0.0
    %189 = vmatpush1.msra.mxu0 0.0
    %190 = vmatprep.subr.mxu0 0.0
    %191 = vmatpush1.msra.mxu0 0.0
    %192 = vmatprep.subr.mxu0 0.0
    %193 = vmatpush1.msra.mxu0 0.0
    %194 = vmatprep.subr.mxu0 0.0
    %195 = vmatpush1.msra.mxu0 0.0
    %196 = vmatprep.subr.mxu0 0.0
    %197 = vmatpush1.msra.mxu0 0.0
    %198 = vmatprep.subr.mxu0 0.0
    %199 = vmatpush1.msra.mxu0 0.0
    %200 = vmatprep.subr.mxu0 0.0
    %201 = vmatpush1.msra.mxu0 0.0
    %202 = vmatprep.subr.mxu0 0.0
    %203 = vmatpush1.msra.mxu0 0.0
    %204 = vmatprep.subr.mxu0 0.0
    %205 = vmatpush1.msra.mxu0 0.0
    %206 = vmatprep.subr.mxu0 0.0
    %207 = vmatpush1.msra.mxu0 0.0
    %208 = vmatprep.subr.mxu0 0.0
    %209 = vmatpush1.msra.mxu0 0.0
    %210 = vmatprep.subr.mxu0 0.0
    %211 = vmatpush1.msra.mxu0 0.0
    %212 = vmatprep.subr.mxu0 0.0
    %213 = vmatpush1.msra.mxu0 0.0
    %214 = vmatprep.subr.mxu0 0.0
    %215 = vmatpush1.msra.mxu0 0.0
    %216 = vmatprep.subr.mxu0 0.0
    %217 = vmatpush1.msra.mxu0 0.0
    %218 = vmatprep.subr.mxu0 0.0
    %219 = vmatpush1.msra.mxu0 0.0
    %220 = vmatprep.subr.mxu0 0.0
    %221 = vmatpush1.msra.mxu0 0.0
    %222 = vmatprep.subr.mxu0 0.0
    %223 = vmatpush1.msra.mxu0 0.0
    %224 = vmatprep.mubr.f32.mxu0 0.0
    %225 = vmatmul.mubr.f32.gmra.mrb[0].mxu0 %v155
    %v226 = vpop.f32.mrb[0].mxu0
    %v227 = vadd.f32 %v149, %v226
    %v228 = vpop.f32.mrb[0].mxu0
    %229 = vmatprep.mubr.f32.mxu0 0.0
    %230 = vmatmul.mubr.f32.gmra.mrb[0].mxu0 %v158
    %v231 = vpop.f32.mrb[0].mxu0
    %v232 = vadd.f32 %v151, %v231
    %v233 = vpop.f32.mrb[0].mxu0
    %234 = vdwg.mxu0
    %v235 = vmul.f32 %v227, %v227
    %v236 = vmul.f32 %v232, %v232
    %vm237 = vcmask 130048
    %v238 = vsel %vm237, %v235, 0.0
    %239 = vadd.xlane.f32.xlu0 %v238
    %v240 = vpop.xlane.xlu0 %239
    %v241 = vsel %vm237, %v236, 0.0
    %242 = vadd.xlane.f32.xlu0 %v241
    %v243 = vpop.xlane.xlu0 %242
    %v244 = vrcp.pop 16.0
    %v245 = vmul.f32 %v240, %v244
    %v246 = vmul.f32 %v243, %v244
    %v247 = vadd.f32 %v245, 1e-06
    %v248 = vadd.f32 %v246, 1e-06
    %v249 = vrsqrt.pop %v247
    %v250 = vrsqrt.pop %v248
    %v251 = vmul.f32 %v227, %v249
    %v252 = vmul.f32 %v232, %v250
    %253 = vrot.lane.b32.xlu0 %v74, 64
    %v254 = vpop.permute.xlu0 %253
    %255 = vrot.lane.b32.xlu0 %v75, 64
    %v256 = vpop.permute.xlu0 %255
    %v259 = vmul.f32 %v251, %v254
    %v260 = vmul.f32 %v252, %v256
    %v261 = vsel %vm237, %v259, %v227
    %v262 = vsel %vm237, %v260, %v232
    %271 = vrot.lane.b32.xlu0 %v64, 96
    %v272 = vpop.permute.xlu0 %271
    %273 = vrot.lane.b32.xlu0 %v68, 96
    %v274 = vpop.permute.xlu0 %273
    %275 = vrot.lane.b32.xlu0 %v65, 96
    %v276 = vpop.permute.xlu0 %275
    %277 = vrot.lane.b32.xlu0 %v69, 96
    %v278 = vpop.permute.xlu0 %277
    %279 = vrot.lane.b32.xlu0 %v66, 96
    %v280 = vpop.permute.xlu0 %279
    %281 = vrot.lane.b32.xlu0 %v70, 96
    %v282 = vpop.permute.xlu0 %281
    %283 = vrot.lane.b32.xlu0 %v67, 96
    %v284 = vpop.permute.xlu0 %283
    %285 = vrot.lane.b32.xlu0 %v71, 96
    %v286 = vpop.permute.xlu0 %285
    %vm287 = vcmask 785408
    %v288 = vsel %vm287, %v272, %v274
    %v289 = vsel %vm287, %v276, %v278
    %v290 = vsel %vm287, %v280, %v282
    %v291 = vsel %vm287, %v284, %v286
    %v301 = vsel %vm128, %v261, 0
    %v304 = vsel %vm128, %v262, 0
    %306 = vmatprep.subr.mxu0 %v274
    %307 = vmatpush1.msra.mxu0 %v288
    %308 = vmatprep.subr.mxu0 %v278
    %309 = vmatpush1.msra.mxu0 %v289
    %310 = vmatprep.subr.mxu0 %v282
    %311 = vmatpush1.msra.mxu0 %v290
    %312 = vmatprep.subr.mxu0 %v286
    %313 = vmatpush1.msra.mxu0 %v291
    %314 = vmatprep.subr.mxu0 0.0
    %315 = vmatpush1.msra.mxu0 0.0
    %316 = vmatprep.subr.mxu0 0.0
    %317 = vmatpush1.msra.mxu0 0.0
    %318 = vmatprep.subr.mxu0 0.0
    %319 = vmatpush1.msra.mxu0 0.0
    %320 = vmatprep.subr.mxu0 0.0
    %321 = vmatpush1.msra.mxu0 0.0
    %322 = vmatprep.subr.mxu0 0.0
    %323 = vmatpush1.msra.mxu0 0.0
    %324 = vmatprep.subr.mxu0 0.0
    %325 = vmatpush1.msra.mxu0 0.0
    %326 = vmatprep.subr.mxu0 0.0
    %327 = vmatpush1.msra.mxu0 0.0
    %328 = vmatprep.subr.mxu0 0.0
    %329 = vmatpush1.msra.mxu0 0.0
    %330 = vmatprep.subr.mxu0 0.0
    %331 = vmatpush1.msra.mxu0 0.0
    %332 = vmatprep.subr.mxu0 0.0
    %333 = vmatpush1.msra.mxu0 0.0
    %334 = vmatprep.subr.mxu0 0.0
    %335 = vmatpush1.msra.mxu0 0.0
    %336 = vmatprep.subr.mxu0 0.0
    %337 = vmatpush1.msra.mxu0 0.0
    %338 = vmatprep.subr.mxu0 0.0
    %339 = vmatpush1.msra.mxu0 0.0
    %340 = vmatprep.subr.mxu0 0.0
    %341 = vmatpush1.msra.mxu0 0.0
    %342 = vmatprep.subr.mxu0 0.0
    %343 = vmatpush1.msra.mxu0 0.0
    %344 = vmatprep.subr.mxu0 0.0
    %345 = vmatpush1.msra.mxu0 0.0
    %346 = vmatprep.subr.mxu0 0.0
    %347 = vmatpush1.msra.mxu0 0.0
    %348 = vmatprep.subr.mxu0 0.0
    %349 = vmatpush1.msra.mxu0 0.0
    %350 = vmatprep.subr.mxu0 0.0
    %351 = vmatpush1.msra.mxu0 0.0
    %352 = vmatprep.subr.mxu0 0.0
    %353 = vmatpush1.msra.mxu0 0.0
    %354 = vmatprep.subr.mxu0 0.0
    %355 = vmatpush1.msra.mxu0 0.0
    %356 = vmatprep.subr.mxu0 0.0
    %357 = vmatpush1.msra.mxu0 0.0
    %358 = vmatprep.subr.mxu0 0.0
    %359 = vmatpush1.msra.mxu0 0.0
    %360 = vmatprep.subr.mxu0 0.0
    %361 = vmatpush1.msra.mxu0 0.0
    %362 = vmatprep.subr.mxu0 0.0
    %363 = vmatpush1.msra.mxu0 0.0
    %364 = vmatprep.subr.mxu0 0.0
    %365 = vmatpush1.msra.mxu0 0.0
    %366 = vmatprep.subr.mxu0 0.0
    %367 = vmatpush1.msra.mxu0 0.0
    %368 = vmatprep.subr.mxu0 0.0
    %369 = vmatpush1.msra.mxu0 0.0
    %370 = vmatprep.mubr.f32.mxu0 0.0
    %371 = vmatmul.mubr.f32.gmra.mrb[0].mxu0 %v301
    %v372 = vpop.f32.mrb[0].mxu0
    %v373 = vadd.f32 0.0, %v372
    %v374 = vpop.f32.mrb[0].mxu0
    %v375 = vadd.f32 0.0, %v374
    %376 = vmatprep.mubr.f32.mxu0 0.0
    %377 = vmatmul.mubr.f32.gmra.mrb[0].mxu0 %v304
    %v378 = vpop.f32.mrb[0].mxu0
    %v379 = vadd.f32 0.0, %v378
    %v380 = vpop.f32.mrb[0].mxu0
    %v381 = vadd.f32 0.0, %v380
    %382 = vdwg.mxu0
    %v383 = vmul.f32 %v373, %v72
    %v384 = vmul.f32 %v379, %v73
    %387 = vrot.lane.b32.xlu0 %v383, 96
    %v388 = vpop.permute.xlu0 %387
    %389 = vrot.lane.b32.xlu0 %v384, 96
    %v390 = vpop.permute.xlu0 %389
    %v393 = vadd.f32 %v383, %v388
    %v394 = vadd.f32 %v384, %v390
    %397 = vrot.lane.b32.xlu0 %v72, 96
    %v398 = vpop.permute.xlu0 %397
    %399 = vrot.lane.b32.xlu0 %v73, 96
    %v400 = vpop.permute.xlu0 %399
    %v403 = vmul.f32 %v373, %v398
    %v404 = vmul.f32 %v379, %v400
    %v405 = vmul.f32 %v375, %v398
    %v406 = vmul.f32 %v381, %v400
    %409 = vrot.lane.b32.xlu0 %v405, 96
    %v410 = vpop.permute.xlu0 %409
    %411 = vrot.lane.b32.xlu0 %v406, 96
    %v412 = vpop.permute.xlu0 %411
    %v415 = vadd.f32 %v403, %v410
    %v416 = vadd.f32 %v404, %v412
    %v417 = vmul.f32 %v393, %v118
    %v418 = vmul.f32 %v394, %v119
    %v419 = vmul.f32 %v393, %v120
    %v420 = vmul.f32 %v394, %v121
    %v421 = vmul.f32 %v393, %v122
    %v422 = vmul.f32 %v394, %v123
    %v423 = vmul.f32 %v393, %v124
    %v424 = vmul.f32 %v394, %v125
    %433 = vrot.lane.b32.xlu0 %v118, 64
    %v434 = vpop.permute.xlu0 %433
    %435 = vrot.lane.b32.xlu0 %v119, 64
    %v436 = vpop.permute.xlu0 %435
    %437 = vrot.lane.b32.xlu0 %v120, 64
    %v438 = vpop.permute.xlu0 %437
    %439 = vrot.lane.b32.xlu0 %v121, 64
    %v440 = vpop.permute.xlu0 %439
    %441 = vrot.lane.b32.xlu0 %v122, 64
    %v442 = vpop.permute.xlu0 %441
    %443 = vrot.lane.b32.xlu0 %v123, 64
    %v444 = vpop.permute.xlu0 %443
    %445 = vrot.lane.b32.xlu0 %v124, 64
    %v446 = vpop.permute.xlu0 %445
    %447 = vrot.lane.b32.xlu0 %v125, 64
    %v448 = vpop.permute.xlu0 %447
    %v457 = vmul.f32 %v373, %v434
    %v458 = vmul.f32 %v379, %v436
    %v459 = vmul.f32 %v373, %v438
    %v460 = vmul.f32 %v379, %v440
    %v461 = vmul.f32 %v373, %v442
    %v462 = vmul.f32 %v379, %v444
    %v463 = vmul.f32 %v373, %v446
    %v464 = vmul.f32 %v379, %v448
    %467 = vrot.lane.b32.xlu0 %v415, 32
    %v468 = vpop.permute.xlu0 %467
    %469 = vrot.lane.b32.xlu0 %v416, 32
    %v470 = vpop.permute.xlu0 %469
    %471 = vrot.lane.b32.xlu0 %v72, 64
    %v472 = vpop.permute.xlu0 %471
    %473 = vrot.lane.b32.xlu0 %v73, 64
    %v474 = vpop.permute.xlu0 %473
    %v477 = vsel %vm128, %v468, 0
    %v479 = vsel %vm128, %v470, 0
    %v482 = vsel %vm128, %v417, 0
    %v485 = vsel %vm128, %v418, 0
    %v488 = vsel %vm128, %v419, 0
    %v491 = vsel %vm128, %v420, 0
    %v494 = vsel %vm128, %v421, 0
    %v497 = vsel %vm128, %v422, 0
    %v500 = vsel %vm128, %v423, 0
    %v503 = vsel %vm128, %v424, 0
    %505 = vmatprep.subr.mxu0 0.0
    %506 = vmatpush1.xpose.msra.mxu0 %v482
    %507 = vmatprep.subr.mxu0 0.0
    %508 = vmatpush1.xpose.msra.mxu0 %v485
    %509 = vmatprep.subr.mxu0 0.0
    %510 = vmatpush1.xpose.msra.mxu0 %v488
    %511 = vmatprep.subr.mxu0 0.0
    %512 = vmatpush1.xpose.msra.mxu0 %v491
    %513 = vmatprep.subr.mxu0 0.0
    %514 = vmatpush1.xpose.msra.mxu0 %v494
    %515 = vmatprep.subr.mxu0 0.0
    %516 = vmatpush1.xpose.msra.mxu0 %v497
    %517 = vmatprep.subr.mxu0 0.0
    %518 = vmatpush1.xpose.msra.mxu0 %v500
    %519 = vmatprep.subr.mxu0 0.0
    %520 = vmatpush1.xpose.msra.mxu0 %v503
    %521 = vmatprep.subr.mxu0 0.0
    %522 = vmatpush1.xpose.msra.mxu0 0.0
    %523 = vmatprep.subr.mxu0 0.0
    %524 = vmatpush1.xpose.msra.mxu0 0.0
    %525 = vmatprep.subr.mxu0 0.0
    %526 = vmatpush1.xpose.msra.mxu0 0.0
    %527 = vmatprep.subr.mxu0 0.0
    %528 = vmatpush1.xpose.msra.mxu0 0.0
    %529 = vmatprep.subr.mxu0 0.0
    %530 = vmatpush1.xpose.msra.mxu0 0.0
    %531 = vmatprep.subr.mxu0 0.0
    %532 = vmatpush1.xpose.msra.mxu0 0.0
    %533 = vmatprep.subr.mxu0 0.0
    %534 = vmatpush1.xpose.msra.mxu0 0.0
    %535 = vmatprep.subr.mxu0 0.0
    %536 = vmatpush1.xpose.msra.mxu0 0.0
    %537 = vmatprep.subr.mxu0 0.0
    %538 = vmatpush1.xpose.msra.mxu0 0.0
    %539 = vmatprep.subr.mxu0 0.0
    %540 = vmatpush1.xpose.msra.mxu0 0.0
    %541 = vmatprep.subr.mxu0 0.0
    %542 = vmatpush1.xpose.msra.mxu0 0.0
    %543 = vmatprep.subr.mxu0 0.0
    %544 = vmatpush1.xpose.msra.mxu0 0.0
    %545 = vmatprep.subr.mxu0 0.0
    %546 = vmatpush1.xpose.msra.mxu0 0.0
    %547 = vmatprep.subr.mxu0 0.0
    %548 = vmatpush1.xpose.msra.mxu0 0.0
    %549 = vmatprep.subr.mxu0 0.0
    %550 = vmatpush1.xpose.msra.mxu0 0.0
    %551 = vmatprep.subr.mxu0 0.0
    %552 = vmatpush1.xpose.msra.mxu0 0.0
    %553 = vmatprep.subr.mxu0 0.0
    %554 = vmatpush1.xpose.msra.mxu0 0.0
    %555 = vmatprep.subr.mxu0 0.0
    %556 = vmatpush1.xpose.msra.mxu0 0.0
    %557 = vmatprep.subr.mxu0 0.0
    %558 = vmatpush1.xpose.msra.mxu0 0.0
    %559 = vmatprep.subr.mxu0 0.0
    %560 = vmatpush1.xpose.msra.mxu0 0.0
    %561 = vmatprep.subr.mxu0 0.0
    %562 = vmatpush1.xpose.msra.mxu0 0.0
    %563 = vmatprep.subr.mxu0 0.0
    %564 = vmatpush1.xpose.msra.mxu0 0.0
    %565 = vmatprep.subr.mxu0 0.0
    %566 = vmatpush1.xpose.msra.mxu0 0.0
    %567 = vmatprep.subr.mxu0 0.0
    %568 = vmatpush1.xpose.msra.mxu0 0.0
    %569 = vmatprep.mubr.f32.mxu0 0.0
    %570 = vmatmul.mubr.f32.gmra.mrb[0].mxu0 %v477
    %v571 = vpop.f32.mrb[0].mxu0
    %v572 = vadd.f32 %v472, %v571
    %v573 = vpop.f32.mrb[0].mxu0
    %574 = vmatprep.mubr.f32.mxu0 0.0
    %575 = vmatmul.mubr.f32.gmra.mrb[0].mxu0 %v479
    %v576 = vpop.f32.mrb[0].mxu0
    %v577 = vadd.f32 %v474, %v576
    %v578 = vpop.f32.mrb[0].mxu0
    %579 = vdwg.mxu0
    %vm580 = vcmask 523264
    %v581 = vsel %vm580, %v572, -inf
    %582 = vmax.xlane.f32.xlu0 %v581
    %v583 = vpop.xlane.xlu0 %582
    %v584 = vsel %vm580, %v577, -inf
    %585 = vmax.xlane.f32.xlu0 %v584
    %v586 = vpop.xlane.xlu0 %585
    %v587 = vsub.f32 %v572, %v583
    %v588 = vsub.f32 %v577, %v586
    %v589 = vmul.f32 %v587, 1.442695
    %v590 = vpow.pop %v589
    %v591 = vmul.f32 %v588, 1.442695
    %v592 = vpow.pop %v591
    %601 = vrot.lane.b32.xlu0 %v457, 64
    %v602 = vpop.permute.xlu0 %601
    %603 = vrot.lane.b32.xlu0 %v458, 64
    %v604 = vpop.permute.xlu0 %603
    %605 = vrot.lane.b32.xlu0 %v459, 64
    %v606 = vpop.permute.xlu0 %605
    %607 = vrot.lane.b32.xlu0 %v460, 64
    %v608 = vpop.permute.xlu0 %607
    %609 = vrot.lane.b32.xlu0 %v461, 64
    %v610 = vpop.permute.xlu0 %609
    %611 = vrot.lane.b32.xlu0 %v462, 64
    %v612 = vpop.permute.xlu0 %611
    %613 = vrot.lane.b32.xlu0 %v463, 64
    %v614 = vpop.permute.xlu0 %613
    %615 = vrot.lane.b32.xlu0 %v464, 64
    %v616 = vpop.permute.xlu0 %615
    %625 = vrot.lane.b32.xlu0 %v118, 32
    %v626 = vpop.permute.xlu0 %625
    %627 = vrot.lane.b32.xlu0 %v119, 32
    %v628 = vpop.permute.xlu0 %627
    %629 = vrot.lane.b32.xlu0 %v120, 32
    %v630 = vpop.permute.xlu0 %629
    %631 = vrot.lane.b32.xlu0 %v121, 32
    %v632 = vpop.permute.xlu0 %631
    %633 = vrot.lane.b32.xlu0 %v122, 32
    %v634 = vpop.permute.xlu0 %633
    %635 = vrot.lane.b32.xlu0 %v123, 32
    %v636 = vpop.permute.xlu0 %635
    %637 = vrot.lane.b32.xlu0 %v124, 32
    %v638 = vpop.permute.xlu0 %637
    %639 = vrot.lane.b32.xlu0 %v125, 32
    %v640 = vpop.permute.xlu0 %639
    %v649 = vsel %vm128, %v602, %v626
    %v650 = vsel %vm128, %v604, %v628
    %v651 = vsel %vm128, %v606, %v630
    %v652 = vsel %vm128, %v608, %v632
    %v653 = vsel %vm128, %v610, %v634
    %v654 = vsel %vm128, %v612, %v636
    %v655 = vsel %vm128, %v614, %v638
    %v656 = vsel %vm128, %v616, %v640
    %v658 = vsel %vm580, %v590, 0
    %v661 = vsel %vm580, %v592, 0
    %663 = vmatprep.subr.mxu0 0.0
    %664 = vmatpush1.msra.mxu0 %v649
    %665 = vmatprep.subr.mxu0 0.0
    %666 = vmatpush1.msra.mxu0 %v650
    %667 = vmatprep.subr.mxu0 0.0
    %668 = vmatpush1.msra.mxu0 %v651
    %669 = vmatprep.subr.mxu0 0.0
    %670 = vmatpush1.msra.mxu0 %v652
    %671 = vmatprep.subr.mxu0 0.0
    %672 = vmatpush1.msra.mxu0 %v653
    %673 = vmatprep.subr.mxu0 0.0
    %674 = vmatpush1.msra.mxu0 %v654
    %675 = vmatprep.subr.mxu0 0.0
    %676 = vmatpush1.msra.mxu0 %v655
    %677 = vmatprep.subr.mxu0 0.0
    %678 = vmatpush1.msra.mxu0 %v656
    %679 = vmatprep.subr.mxu0 0.0
    %680 = vmatpush1.msra.mxu0 0.0
    %681 = vmatprep.subr.mxu0 0.0
    %682 = vmatpush1.msra.mxu0 0.0
    %683 = vmatprep.subr.mxu0 0.0
    %684 = vmatpush1.msra.mxu0 0.0
    %685 = vmatprep.subr.mxu0 0.0
    %686 = vmatpush1.msra.mxu0 0.0
    %687 = vmatprep.subr.mxu0 0.0
    %688 = vmatpush1.msra.mxu0 0.0
    %689 = vmatprep.subr.mxu0 0.0
    %690 = vmatpush1.msra.mxu0 0.0
    %691 = vmatprep.subr.mxu0 0.0
    %692 = vmatpush1.msra.mxu0 0.0
    %693 = vmatprep.subr.mxu0 0.0
    %694 = vmatpush1.msra.mxu0 0.0
    %695 = vmatprep.subr.mxu0 0.0
    %696 = vmatpush1.msra.mxu0 0.0
    %697 = vmatprep.subr.mxu0 0.0
    %698 = vmatpush1.msra.mxu0 0.0
    %699 = vmatprep.subr.mxu0 0.0
    %700 = vmatpush1.msra.mxu0 0.0
    %701 = vmatprep.subr.mxu0 0.0
    %702 = vmatpush1.msra.mxu0 0.0
    %703 = vmatprep.subr.mxu0 0.0
    %704 = vmatpush1.msra.mxu0 0.0
    %705 = vmatprep.subr.mxu0 0.0
    %706 = vmatpush1.msra.mxu0 0.0
    %707 = vmatprep.subr.mxu0 0.0
    %708 = vmatpush1.msra.mxu0 0.0
    %709 = vmatprep.subr.mxu0 0.0
    %710 = vmatpush1.msra.mxu0 0.0
    %711 = vmatprep.subr.mxu0 0.0
    %712 = vmatpush1.msra.mxu0 0.0
    %713 = vmatprep.subr.mxu0 0.0
    %714 = vmatpush1.msra.mxu0 0.0
    %715 = vmatprep.subr.mxu0 0.0
    %716 = vmatpush1.msra.mxu0 0.0
    %717 = vmatprep.subr.mxu0 0.0
    %718 = vmatpush1.msra.mxu0 0.0
    %719 = vmatprep.subr.mxu0 0.0
    %720 = vmatpush1.msra.mxu0 0.0
    %721 = vmatprep.subr.mxu0 0.0
    %722 = vmatpush1.msra.mxu0 0.0
    %723 = vmatprep.subr.mxu0 0.0
    %724 = vmatpush1.msra.mxu0 0.0
    %725 = vmatprep.subr.mxu0 0.0
    %726 = vmatpush1.msra.mxu0 0.0
    %727 = vmatprep.mubr.f32.mxu0 0.0
    %728 = vmatmul.mubr.f32.gmra.mrb[0].mxu0 %v658
    %v729 = vpop.f32.mrb[0].mxu0
    %v730 = vadd.f32 0.0, %v729
    %v731 = vpop.f32.mrb[0].mxu0
    %732 = vmatprep.mubr.f32.mxu0 0.0
    %733 = vmatmul.mubr.f32.gmra.mrb[0].mxu0 %v661
    %v734 = vpop.f32.mrb[0].mxu0
    %v735 = vadd.f32 0.0, %v734
    %v736 = vpop.f32.mrb[0].mxu0
    %737 = vdwg.mxu0
    %v738 = vrcp.pop %v730
    %v739 = vrcp.pop %v735
    %742 = vrot.lane.b32.xlu0 %v738, 96
    %v743 = vpop.permute.xlu0 %742
    %744 = vrot.lane.b32.xlu0 %v739, 96
    %v745 = vpop.permute.xlu0 %744
    %v748 = vmul.f32 %v730, %v743
    %v749 = vmul.f32 %v735, %v745
    %750 = vrot.lane.b32.xlu0 %v68, 64
    %v751 = vpop.permute.xlu0 %750
    %752 = vrot.lane.b32.xlu0 %v69, 64
    %v753 = vpop.permute.xlu0 %752
    %754 = vrot.lane.b32.xlu0 %v70, 64
    %v755 = vpop.permute.xlu0 %754
    %756 = vrot.lane.b32.xlu0 %v71, 64
    %v757 = vpop.permute.xlu0 %756
    %v763 = vsel %vm128, %v748, 0
    %v766 = vsel %vm128, %v749, 0
    %768 = vmatprep.subr.mxu0 0.0
    %769 = vmatpush1.msra.mxu0 %v751
    %770 = vmatprep.subr.mxu0 0.0
    %771 = vmatpush1.msra.mxu0 %v753
    %772 = vmatprep.subr.mxu0 0.0
    %773 = vmatpush1.msra.mxu0 %v755
    %774 = vmatprep.subr.mxu0 0.0
    %775 = vmatpush1.msra.mxu0 %v757
    %776 = vmatprep.subr.mxu0 0.0
    %777 = vmatpush1.msra.mxu0 0.0
    %778 = vmatprep.subr.mxu0 0.0
    %779 = vmatpush1.msra.mxu0 0.0
    %780 = vmatprep.subr.mxu0 0.0
    %781 = vmatpush1.msra.mxu0 0.0
    %782 = vmatprep.subr.mxu0 0.0
    %783 = vmatpush1.msra.mxu0 0.0
    %784 = vmatprep.subr.mxu0 0.0
    %785 = vmatpush1.msra.mxu0 0.0
    %786 = vmatprep.subr.mxu0 0.0
    %787 = vmatpush1.msra.mxu0 0.0
    %788 = vmatprep.subr.mxu0 0.0
    %789 = vmatpush1.msra.mxu0 0.0
    %790 = vmatprep.subr.mxu0 0.0
    %791 = vmatpush1.msra.mxu0 0.0
    %792 = vmatprep.subr.mxu0 0.0
    %793 = vmatpush1.msra.mxu0 0.0
    %794 = vmatprep.subr.mxu0 0.0
    %795 = vmatpush1.msra.mxu0 0.0
    %796 = vmatprep.subr.mxu0 0.0
    %797 = vmatpush1.msra.mxu0 0.0
    %798 = vmatprep.subr.mxu0 0.0
    %799 = vmatpush1.msra.mxu0 0.0
    %800 = vmatprep.subr.mxu0 0.0
    %801 = vmatpush1.msra.mxu0 0.0
    %802 = vmatprep.subr.mxu0 0.0
    %803 = vmatpush1.msra.mxu0 0.0
    %804 = vmatprep.subr.mxu0 0.0
    %805 = vmatpush1.msra.mxu0 0.0
    %806 = vmatprep.subr.mxu0 0.0
    %807 = vmatpush1.msra.mxu0 0.0
    %808 = vmatprep.subr.mxu0 0.0
    %809 = vmatpush1.msra.mxu0 0.0
    %810 = vmatprep.subr.mxu0 0.0
    %811 = vmatpush1.msra.mxu0 0.0
    %812 = vmatprep.subr.mxu0 0.0
    %813 = vmatpush1.msra.mxu0 0.0
    %814 = vmatprep.subr.mxu0 0.0
    %815 = vmatpush1.msra.mxu0 0.0
    %816 = vmatprep.subr.mxu0 0.0
    %817 = vmatpush1.msra.mxu0 0.0
    %818 = vmatprep.subr.mxu0 0.0
    %819 = vmatpush1.msra.mxu0 0.0
    %820 = vmatprep.subr.mxu0 0.0
    %821 = vmatpush1.msra.mxu0 0.0
    %822 = vmatprep.subr.mxu0 0.0
    %823 = vmatpush1.msra.mxu0 0.0
    %824 = vmatprep.subr.mxu0 0.0
    %825 = vmatpush1.msra.mxu0 0.0
    %826 = vmatprep.subr.mxu0 0.0
    %827 = vmatpush1.msra.mxu0 0.0
    %828 = vmatprep.subr.mxu0 0.0
    %829 = vmatpush1.msra.mxu0 0.0
    %830 = vmatprep.subr.mxu0 0.0
    %831 = vmatpush1.msra.mxu0 0.0
    %832 = vmatprep.mubr.f32.mxu0 0.0
    %833 = vmatmul.mubr.f32.gmra.mrb[0].mxu0 %v763
    %v834 = vpop.f32.mrb[0].mxu0
    %v835 = vadd.f32 0.0, %v834
    %v836 = vpop.f32.mrb[0].mxu0
    %837 = vmatprep.mubr.f32.mxu0 0.0
    %838 = vmatmul.mubr.f32.gmra.mrb[0].mxu0 %v766
    %v839 = vpop.f32.mrb[0].mxu0
    %v840 = vadd.f32 0.0, %v839
    %v841 = vpop.f32.mrb[0].mxu0
    %842 = vdwg.mxu0
    %v843 = vadd.f32 %v80, %v835
    %v844 = vadd.f32 %v81, %v840
    %845 = vrot.lane.b32.xlu0 %v74, 48
    %v846 = vpop.permute.xlu0 %845
    %847 = vrot.lane.b32.xlu0 %v75, 48
    %v848 = vpop.permute.xlu0 %847
    %v851 = vadd.f32 %v843, %v846
    %v852 = vadd.f32 %v844, %v848
    %v853 = vmul.f32 %v851, %v851
    %v854 = vmul.f32 %v852, %v852
    %v855 = vsel %vm128, %v853, 0.0
    %856 = vadd.xlane.f32.xlu0 %v855
    %v857 = vpop.xlane.xlu0 %856
    %v858 = vsel %vm128, %v854, 0.0
    %859 = vadd.xlane.f32.xlu0 %v858
    %v860 = vpop.xlane.xlu0 %859
    %v861 = vmul.f32 %v857, %v135
    %v862 = vmul.f32 %v860, %v135
    %v863 = vadd.f32 %v861, 1e-06
    %v864 = vadd.f32 %v862, 1e-06
    %v865 = vrsqrt.pop %v863
    %v866 = vrsqrt.pop %v864
    %v867 = vmul.f32 %v851, %v865
    %v868 = vmul.f32 %v852, %v866
    %871 = vrot.lane.b32.xlu0 %v74, 16
    %v872 = vpop.permute.xlu0 %871
    %873 = vrot.lane.b32.xlu0 %v76, 16
    %v874 = vpop.permute.xlu0 %873
    %875 = vrot.lane.b32.xlu0 %v75, 16
    %v876 = vpop.permute.xlu0 %875
    %877 = vrot.lane.b32.xlu0 %v77, 16
    %v878 = vpop.permute.xlu0 %877
    %v879 = vsel %vm237, %v872, %v874
    %v880 = vsel %vm237, %v876, %v878
    %v883 = vmul.f32 %v867, %v879
    %v884 = vmul.f32 %v868, %v880
    %887 = vrot.lane.b32.xlu0 %v76, 112
    %v888 = vpop.permute.xlu0 %887
    %889 = vrot.lane.b32.xlu0 %v78, 112
    %v890 = vpop.permute.xlu0 %889
    %891 = vrot.lane.b32.xlu0 %v77, 112
    %v892 = vpop.permute.xlu0 %891
    %893 = vrot.lane.b32.xlu0 %v79, 112
    %v894 = vpop.permute.xlu0 %893
    %vm895 = vcmask 916480
    %v896 = vsel %vm895, %v888, %v890
    %v897 = vsel %vm895, %v892, %v894
    %v901 = vsel %vm128, %v883, 0
    %v904 = vsel %vm128, %v884, 0
    %906 = vmatprep.subr.mxu0 0.0
    %907 = vmatpush1.msra.mxu0 %v56
    %908 = vmatprep.subr.mxu0 0.0
    %909 = vmatpush1.msra.mxu0 %v57
    %910 = vmatprep.subr.mxu0 0.0
    %911 = vmatpush1.msra.mxu0 %v58
    %912 = vmatprep.subr.mxu0 0.0
    %913 = vmatpush1.msra.mxu0 %v59
    %914 = vmatprep.subr.mxu0 0.0
    %915 = vmatpush1.msra.mxu0 0.0
    %916 = vmatprep.subr.mxu0 0.0
    %917 = vmatpush1.msra.mxu0 0.0
    %918 = vmatprep.subr.mxu0 0.0
    %919 = vmatpush1.msra.mxu0 0.0
    %920 = vmatprep.subr.mxu0 0.0
    %921 = vmatpush1.msra.mxu0 0.0
    %922 = vmatprep.subr.mxu0 0.0
    %923 = vmatpush1.msra.mxu0 0.0
    %924 = vmatprep.subr.mxu0 0.0
    %925 = vmatpush1.msra.mxu0 0.0
    %926 = vmatprep.subr.mxu0 0.0
    %927 = vmatpush1.msra.mxu0 0.0
    %928 = vmatprep.subr.mxu0 0.0
    %929 = vmatpush1.msra.mxu0 0.0
    %930 = vmatprep.subr.mxu0 0.0
    %931 = vmatpush1.msra.mxu0 0.0
    %932 = vmatprep.subr.mxu0 0.0
    %933 = vmatpush1.msra.mxu0 0.0
    %934 = vmatprep.subr.mxu0 0.0
    %935 = vmatpush1.msra.mxu0 0.0
    %936 = vmatprep.subr.mxu0 0.0
    %937 = vmatpush1.msra.mxu0 0.0
    %938 = vmatprep.subr.mxu0 0.0
    %939 = vmatpush1.msra.mxu0 0.0
    %940 = vmatprep.subr.mxu0 0.0
    %941 = vmatpush1.msra.mxu0 0.0
    %942 = vmatprep.subr.mxu0 0.0
    %943 = vmatpush1.msra.mxu0 0.0
    %944 = vmatprep.subr.mxu0 0.0
    %945 = vmatpush1.msra.mxu0 0.0
    %946 = vmatprep.subr.mxu0 0.0
    %947 = vmatpush1.msra.mxu0 0.0
    %948 = vmatprep.subr.mxu0 0.0
    %949 = vmatpush1.msra.mxu0 0.0
    %950 = vmatprep.subr.mxu0 0.0
    %951 = vmatpush1.msra.mxu0 0.0
    %952 = vmatprep.subr.mxu0 0.0
    %953 = vmatpush1.msra.mxu0 0.0
    %954 = vmatprep.subr.mxu0 0.0
    %955 = vmatpush1.msra.mxu0 0.0
    %956 = vmatprep.subr.mxu0 0.0
    %957 = vmatpush1.msra.mxu0 0.0
    %958 = vmatprep.subr.mxu0 0.0
    %959 = vmatpush1.msra.mxu0 0.0
    %960 = vmatprep.subr.mxu0 0.0
    %961 = vmatpush1.msra.mxu0 0.0
    %962 = vmatprep.subr.mxu0 0.0
    %963 = vmatpush1.msra.mxu0 0.0
    %964 = vmatprep.subr.mxu0 0.0
    %965 = vmatpush1.msra.mxu0 0.0
    %966 = vmatprep.subr.mxu0 0.0
    %967 = vmatpush1.msra.mxu0 0.0
    %968 = vmatprep.subr.mxu0 0.0
    %969 = vmatpush1.msra.mxu0 0.0
    %970 = vmatprep.mubr.f32.mxu0 0.0
    %971 = vmatmul.mubr.f32.gmra.mrb[0].mxu0 %v901
    %v972 = vpop.f32.mrb[0].mxu0
    %v973 = vadd.f32 %v896, %v972
    %v974 = vpop.f32.mrb[0].mxu0
    %975 = vmatprep.mubr.f32.mxu0 0.0
    %976 = vmatmul.mubr.f32.gmra.mrb[0].mxu0 %v904
    %v977 = vpop.f32.mrb[0].mxu0
    %v978 = vadd.f32 %v897, %v977
    %v979 = vpop.f32.mrb[0].mxu0
    %980 = vdwg.mxu0
    %v981 = vxor.u32 %v973, 2147483648
    %v982 = vxor.u32 %v978, 2147483648
    %v983 = vmul.f32 %v981, 1.442695
    %v984 = vpow.pop %v983
    %v985 = vmul.f32 %v982, 1.442695
    %v986 = vpow.pop %v985
    %v987 = vadd.f32 %v984, 1.0
    %v988 = vadd.f32 %v986, 1.0
    %v989 = vrcp.pop %v987
    %v990 = vmul.f32 1.0, %v989
    %v991 = vrcp.pop %v988
    %v992 = vmul.f32 1.0, %v991
    %v993 = vmul.f32 %v973, %v990
    %v994 = vmul.f32 %v978, %v992
    %995 = vmatprep.subr.mxu0 0.0
    %996 = vmatpush1.xpose.msra.mxu0 %v60
    %997 = vmatprep.subr.mxu0 0.0
    %998 = vmatpush1.xpose.msra.mxu0 %v61
    %999 = vmatprep.subr.mxu0 0.0
    %1000 = vmatpush1.xpose.msra.mxu0 %v62
    %1001 = vmatprep.subr.mxu0 0.0
    %1002 = vmatpush1.xpose.msra.mxu0 %v63
    %1003 = vmatprep.subr.mxu0 0.0
    %1004 = vmatpush1.xpose.msra.mxu0 0.0
    %1005 = vmatprep.subr.mxu0 0.0
    %1006 = vmatpush1.xpose.msra.mxu0 0.0
    %1007 = vmatprep.subr.mxu0 0.0
    %1008 = vmatpush1.xpose.msra.mxu0 0.0
    %1009 = vmatprep.subr.mxu0 0.0
    %1010 = vmatpush1.xpose.msra.mxu0 0.0
    %1011 = vmatprep.subr.mxu0 0.0
    %1012 = vmatpush1.xpose.msra.mxu0 0.0
    %1013 = vmatprep.subr.mxu0 0.0
    %1014 = vmatpush1.xpose.msra.mxu0 0.0
    %1015 = vmatprep.subr.mxu0 0.0
    %1016 = vmatpush1.xpose.msra.mxu0 0.0
    %1017 = vmatprep.subr.mxu0 0.0
    %1018 = vmatpush1.xpose.msra.mxu0 0.0
    %1019 = vmatprep.subr.mxu0 0.0
    %1020 = vmatpush1.xpose.msra.mxu0 0.0
    %1021 = vmatprep.subr.mxu0 0.0
    %1022 = vmatpush1.xpose.msra.mxu0 0.0
    %1023 = vmatprep.subr.mxu0 0.0
    %1024 = vmatpush1.xpose.msra.mxu0 0.0
    %1025 = vmatprep.subr.mxu0 0.0
    %1026 = vmatpush1.xpose.msra.mxu0 0.0
    %1027 = vmatprep.subr.mxu0 0.0
    %1028 = vmatpush1.xpose.msra.mxu0 0.0
    %1029 = vmatprep.subr.mxu0 0.0
    %1030 = vmatpush1.xpose.msra.mxu0 0.0
    %1031 = vmatprep.subr.mxu0 0.0
    %1032 = vmatpush1.xpose.msra.mxu0 0.0
    %1033 = vmatprep.subr.mxu0 0.0
    %1034 = vmatpush1.xpose.msra.mxu0 0.0
    %1035 = vmatprep.subr.mxu0 0.0
    %1036 = vmatpush1.xpose.msra.mxu0 0.0
    %1037 = vmatprep.subr.mxu0 0.0
    %1038 = vmatpush1.xpose.msra.mxu0 0.0
    %1039 = vmatprep.subr.mxu0 0.0
    %1040 = vmatpush1.xpose.msra.mxu0 0.0
    %1041 = vmatprep.subr.mxu0 0.0
    %1042 = vmatpush1.xpose.msra.mxu0 0.0
    %1043 = vmatprep.subr.mxu0 0.0
    %1044 = vmatpush1.xpose.msra.mxu0 0.0
    %1045 = vmatprep.subr.mxu0 0.0
    %1046 = vmatpush1.xpose.msra.mxu0 0.0
    %1047 = vmatprep.subr.mxu0 0.0
    %1048 = vmatpush1.xpose.msra.mxu0 0.0
    %1049 = vmatprep.subr.mxu0 0.0
    %1050 = vmatpush1.xpose.msra.mxu0 0.0
    %1051 = vmatprep.subr.mxu0 0.0
    %1052 = vmatpush1.xpose.msra.mxu0 0.0
    %1053 = vmatprep.subr.mxu0 0.0
    %1054 = vmatpush1.xpose.msra.mxu0 0.0
    %1055 = vmatprep.subr.mxu0 0.0
    %1056 = vmatpush1.xpose.msra.mxu0 0.0
    %1057 = vmatprep.subr.mxu0 0.0
    %1058 = vmatpush1.xpose.msra.mxu0 0.0
    %1059 = vmatprep.mubr.f32.mxu0 0.0
    %1060 = vmatmul.mubr.f32.gmra.mrb[0].mxu0 %v993
    %v1061 = vpop.f32.mrb[0].mxu0
    %v1062 = vadd.f32 0.0, %v1061
    %v1063 = vpop.f32.mrb[0].mxu0
    %1064 = vmatprep.mubr.f32.mxu0 0.0
    %1065 = vmatmul.mubr.f32.gmra.mrb[0].mxu0 %v994
    %v1066 = vpop.f32.mrb[0].mxu0
    %v1067 = vadd.f32 0.0, %v1066
    %v1068 = vpop.f32.mrb[0].mxu0
    %1069 = vdwg.mxu0
    %v1070 = vadd.f32 %v851, %v1062
    %v1071 = vadd.f32 %v852, %v1067
    %v1074 = vadd.f32 %v1070, %v890
    %v1075 = vadd.f32 %v1071, %v894
    %1076 = vst.msk [vmem:[#allocation8] sm:$0xff] %vm128, %v1074
    %1077 = vst.msk [vmem:[#allocation8 + $0x8] sm:$0xff] %vm128, %v1075
    // Predicated region
    $region26: #{tpu_custom_call.1} parent=1 // pred_check
      _
    $region27: #{tpu_custom_call.1} parent=1 // pred_check_branch
      %1079 = sbr.rel (0) target = $region29
    $region28: #{tpu_custom_call.1} parent=1 // pred_region
      %s1081 = ssub.s32 256, 256
      %1082 = vsyncadd [#allocation4], %s1081
      %s1083 = sshll.u32 [#allocation8], 4
      %s1084 = int_to_ptr.vmem [resolvable:$true] %s1083
      %1089 = dma.vmem_to_hbm [thread:$0]  %s1084, 256, %s3, [#allocation4], 128, 128, 8
    $region29: #{tpu_custom_call.1} parent=1 // pred_fallthru
      _
    // Predicated region
    $region30: #{tpu_custom_call.1} parent=1 // pred_check
      _
    $region31: #{tpu_custom_call.1} parent=1 // pred_check_branch
      %1091 = sbr.rel (0) target = $region33
    $region32: #{tpu_custom_call.1} parent=1 // pred_region
      %1092 = dma.done [#allocation4], 256
    $region33: #{tpu_custom_call.1} parent=1 // pred_fallthru
      _
    %1093 = vsyncpa [#allocation3], 1
    %1094 = vsyncpa [#allocation6], 1
    %1095 = vsyncpa [#allocation4], 1

</llo_original>
